<compile_context>
chip_gen: v6e
topology: v6e:2x2x1
jax: 0.10.0
libtpu: 0.0.40
codegen_flags: <defaults>
</compile_context>

<pallas_src>
import functools

import jax
import jax.numpy as jnp
from jax.experimental import pallas as pl
from jax.experimental.pallas import tpu as pltpu

FEAT = 512        # fc1: 512 -> 512
DOMAIN_NUM = 4    # fc2: 512 -> domain_num
OUT_PAD = 128     # lane-padded fc2 output width (lane-dense stores)
MAX_TB = 1024     # batch-tile upper bound (rows per grid step)
MIN_STEPS = 4     # target grid length: pipelining + megacore sharding on v7x


def _discriminator_kernel(x_ref, w1_ref, b1_ref, w2_ref, b2_ref, o_ref):
    # x_ref : (TB, 512)   bf16 or f32, VMEM, streamed per grid step
    # w1_ref: (512, 512)  bf16 VMEM, resident
    # b1_ref: (1, 512)    f32  VMEM, resident
    # w2_ref: (512, 128)  bf16 VMEM, resident (padded from (512, 4))
    # b2_ref: (1, 128)    f32  VMEM, resident (padded from (4,))
    # o_ref : (TB, 128)   bf16 VMEM, first 4 lanes valid
    x = x_ref[...].astype(jnp.bfloat16)   # no-op when the producer feeds bf16

    # GRL: identity in forward.  fc1 on the MXU (bf16 operands, f32 accum);
    # bias + ReLU in f32 on the VPU (portable to v5e, which lacks bf16 VPU).
    h = jnp.dot(x, w1_ref[...], preferred_element_type=jnp.float32) + b1_ref[...]
    h = jnp.maximum(h, 0.0)

    # Dropout(0.5): identity in eval mode.

    out = jnp.dot(h.astype(jnp.bfloat16), w2_ref[...],
                  preferred_element_type=jnp.float32) + b2_ref[...]
    o_ref[...] = out.astype(o_ref.dtype)   # bf16 store: half the writeback bytes


def prepare_params(w1, b1, w2, b2):
    """One-time parameter prep (hoisted out of the per-call path):
       - cast matmul weights to bf16 (halves resident VMEM + weight DMA),
       - pad fc2 weight/bias out-dim to 128 lanes,
       - reshape biases to (1, N) rows (kept in f32)."""
    w1_p = w1.astype(jnp.bfloat16)
    b1_p = b1.reshape(1, FEAT).astype(jnp.float32)
    w2_p = (jnp.zeros((FEAT, OUT_PAD), jnp.bfloat16)
            .at[:, :DOMAIN_NUM].set(w2.astype(jnp.bfloat16)))
    b2_p = (jnp.zeros((1, OUT_PAD), jnp.float32)
            .at[0, :DOMAIN_NUM].set(b2.astype(jnp.float32)))
    return w1_p, b1_p, w2_p, b2_p


def _choose_tile(B):
    """Pick TB so that there are >= MIN_STEPS grid steps (overlap + v7x
    megacore), padding waste on the ragged last block stays small, and the
    tile is a multiple of 16 rows (bf16 sublane packing)."""
    tb = -(-B // MIN_STEPS)                 # cdiv(B, MIN_STEPS)
    tb = min(MAX_TB, tb)
    tb = max(16, ((tb + 15) // 16) * 16)
    return tb


@functools.partial(jax.jit, static_argnames=("trim_output",))
def discriminator_forward(feature, w1_p, b1_p, w2_p, b2_p, trim_output=True):
    """feature: (B, 512) bf16 (preferred) or f32; params from prepare_params().
    Returns (B, domain_num) f32 logits, or the lane-padded (B, 128) bf16 slab
    when trim_output=False (letting a fused consumer slice it)."""
    B, F = feature.shape
    assert F == FEAT

    TB = _choose_tile(B)
    grid = (pl.cdiv(B, TB),)   # ragged last block: Pallas masks the writes,
                               # no jnp.pad copy of the feature

    out_padded = pl.pallas_call(
        _discriminator_kernel,
        out_shape=jax.ShapeDtypeStruct((B, OUT_PAD), jnp.bfloat16),
        grid_spec=pl.GridSpec(
            grid=grid,
            in_specs=[
                pl.BlockSpec((TB, FEAT), lambda i: (i, 0)),       # x: streamed
                pl.BlockSpec((FEAT, FEAT), lambda i: (0, 0)),     # w1: resident
                pl.BlockSpec((1, FEAT), lambda i: (0, 0)),        # b1: resident
                pl.BlockSpec((FEAT, OUT_PAD), lambda i: (0, 0)),  # w2: resident
                pl.BlockSpec((1, OUT_PAD), lambda i: (0, 0)),     # b2: resident
            ],
            out_specs=pl.BlockSpec((TB, OUT_PAD), lambda i: (i, 0)),
        ),
        compiler_params=pltpu.CompilerParams(
            dimension_semantics=("parallel",)),   # megacore-shardable on v7x
    )(feature, w1_p, b1_p, w2_p, b2_p)

    if trim_output:
        # Tiny (B, 4) slice + cast back to f32 for module-equivalent logits.
        return out_padded[:, :DOMAIN_NUM].astype(jnp.float32)
    return out_padded


def init_params(key):
    """Deterministic init mimicking torch.nn.Linear defaults
    (uniform(-1/sqrt(fan_in), 1/sqrt(fan_in))); weights stored as
    (in_features, out_features) so the kernel computes x @ W + b."""
    k1, k2, k3, k4 = jax.random.split(key, 4)
    bound = 1.0 / jnp.sqrt(jnp.float32(FEAT))
    w1 = jax.random.uniform(k1, (FEAT, FEAT), jnp.float32, -bound, bound)
    b1 = jax.random.uniform(k2, (FEAT,), jnp.float32, -bound, bound)
    w2 = jax.random.uniform(k3, (FEAT, DOMAIN_NUM), jnp.float32, -bound, bound)
    b2 = jax.random.uniform(k4, (DOMAIN_NUM,), jnp.float32, -bound, bound)
    return w1, b1, w2, b2


def reference_forward_f32(feature, w1, b1, w2, b2):
    h = jnp.maximum(feature @ w1 + b1, 0.0)
    return h @ w2 + b2


def reference_forward_bf16(feature, w1, b1, w2, b2):
    """Same numerics as the kernel: bf16 operands, f32 accumulation."""
    h = jnp.dot(feature.astype(jnp.bfloat16), w1.astype(jnp.bfloat16),
                preferred_element_type=jnp.float32) + b1
    h = jnp.maximum(h, 0.0)
    return jnp.dot(h.astype(jnp.bfloat16), w2.astype(jnp.bfloat16),
                   preferred_element_type=jnp.float32) + b2


if __name__ == "__main__":
    key = jax.random.PRNGKey(0)
    kx, kp = jax.random.split(key)

    B = 8  # small batch consistent with the module's (B, 512) input
    # Production path: the upstream producer emits bf16 features directly.
    feature = jax.random.normal(kx, (B, FEAT), jnp.float32).astype(jnp.bfloat16)
    w1, b1, w2, b2 = init_params(kp)
    params = prepare_params(w1, b1, w2, b2)

    out = jax.block_until_ready(discriminator_forward(feature, *params))
    assert out.shape == (B, DOMAIN_NUM), out.shape
    assert out.dtype == jnp.float32, out.dtype

    feat32 = feature.astype(jnp.float32)
    ref_bf16 = reference_forward_bf16(feat32, w1, b1, w2, b2)
    ref_f32 = reference_forward_f32(feat32, w1, b1, w2, b2)
    assert jnp.allclose(out, ref_bf16, atol=1e-2, rtol=1e-2), (
        float(jnp.max(jnp.abs(out - ref_bf16))))
    assert jnp.allclose(out, ref_f32, atol=5e-2, rtol=5e-2), (
        float(jnp.max(jnp.abs(out - ref_f32))))

    # Ragged batch (not a multiple of the tile) on the f32-producer path.
    B2 = 37
    feature2 = jax.random.normal(kx, (B2, FEAT), jnp.float32)
    out2 = jax.block_until_ready(discriminator_forward(feature2, *params))
    ref2 = reference_forward_bf16(feature2, w1, b1, w2, b2)
    assert out2.shape == (B2, DOMAIN_NUM), out2.shape
    assert jnp.allclose(out2, ref2, atol=1e-2, rtol=1e-2), (
        float(jnp.max(jnp.abs(out2 - ref2))))

    # Un-trimmed, lane-padded bf16 slab for fused consumers.
    out3 = jax.block_until_ready(
        discriminator_forward(feature, *params, trim_output=False))
    assert out3.shape == (B, OUT_PAD) and out3.dtype == jnp.bfloat16

    print("KERNEL_OK")
</pallas_src>

<mosaic_0001>
module attributes {stable_mosaic.version = 11 : i64} {
  func.func @_discriminator_kernel(%arg0: i32, %arg1: memref<16x512xbf16, #tpu.memory_space<vmem>>, %arg2: memref<512x512xbf16, #tpu.memory_space<vmem>>, %arg3: memref<1x512xf32, #tpu.memory_space<vmem>>, %arg4: memref<512x128xbf16, #tpu.memory_space<vmem>>, %arg5: memref<1x128xf32, #tpu.memory_space<vmem>>, %arg6: memref<16x128xbf16, #tpu.memory_space<vmem>>) attributes {dimension_semantics = [#tpu.dimension_semantics<parallel>], iteration_bounds = array<i64: 1>, scalar_prefetch = 0 : i64, scratch_operands = 0 : i64, tpu.core_type = #tpu.core_type<tc>, window_params = [{transform_indices = @transform_0, window_bounds = array<i64: 16, 512>}, {pipeline_mode = #tpu.pipeline_mode<synchronous>, transform_indices = @transform_1, window_bounds = array<i64: 512, 512>}, {pipeline_mode = #tpu.pipeline_mode<synchronous>, transform_indices = @transform_2, window_bounds = array<i64: 1, 512>}, {pipeline_mode = #tpu.pipeline_mode<synchronous>, transform_indices = @transform_3, window_bounds = array<i64: 512, 128>}, {pipeline_mode = #tpu.pipeline_mode<synchronous>, transform_indices = @transform_4, window_bounds = array<i64: 1, 128>}, {transform_indices = @transform_5, window_bounds = array<i64: 16, 128>}]} {
    %c0 = arith.constant 0 : index
    %c0_0 = arith.constant 0 : index
    %0 = vector.load %arg1[%c0, %c0_0] : memref<16x512xbf16, #tpu.memory_space<vmem>>, vector<16x512xbf16>
    %c0_1 = arith.constant 0 : index
    %c0_2 = arith.constant 0 : index
    %1 = vector.load %arg2[%c0_1, %c0_2] : memref<512x512xbf16, #tpu.memory_space<vmem>>, vector<512x512xbf16>
    %cst = arith.constant dense<0.000000e+00> : vector<16x512xf32>
    %2 = tpu.matmul %0, %1, %cst {dimension_numbers = #tpu.dot_dimension_numbers<[1], [0], [0], [1], [0, 0, 1, 1], [], []>} : vector<16x512xbf16>, vector<512x512xbf16>, vector<16x512xf32> -> vector<16x512xf32>
    %c0_3 = arith.constant 0 : index
    %c0_4 = arith.constant 0 : index
    %3 = vector.load %arg3[%c0_3, %c0_4] : memref<1x512xf32, #tpu.memory_space<vmem>>, vector<1x512xf32>
    %4 = vector.broadcast %3 : vector<1x512xf32> to vector<16x512xf32>
    %5 = arith.addf %2, %4 : vector<16x512xf32>
    %cst_5 = arith.constant 0.000000e+00 : f32
    %6 = vector.broadcast %cst_5 : f32 to vector<16x512xf32>
    %7 = arith.maximumf %5, %6 : vector<16x512xf32>
    %8 = arith.truncf %7 : vector<16x512xf32> to vector<16x512xbf16>
    %c0_6 = arith.constant 0 : index
    %c0_7 = arith.constant 0 : index
    %9 = vector.load %arg4[%c0_6, %c0_7] : memref<512x128xbf16, #tpu.memory_space<vmem>>, vector<512x128xbf16>
    %cst_8 = arith.constant dense<0.000000e+00> : vector<16x128xf32>
    %10 = tpu.matmul %8, %9, %cst_8 {dimension_numbers = #tpu.dot_dimension_numbers<[1], [0], [0], [1], [0, 0, 1, 1], [], []>} : vector<16x512xbf16>, vector<512x128xbf16>, vector<16x128xf32> -> vector<16x128xf32>
    %c0_9 = arith.constant 0 : index
    %c0_10 = arith.constant 0 : index
    %11 = vector.load %arg5[%c0_9, %c0_10] : memref<1x128xf32, #tpu.memory_space<vmem>>, vector<1x128xf32>
    %12 = vector.broadcast %11 : vector<1x128xf32> to vector<16x128xf32>
    %13 = arith.addf %10, %12 : vector<16x128xf32>
    %14 = arith.truncf %13 : vector<16x128xf32> to vector<16x128xbf16>
    %c0_11 = arith.constant 0 : index
    %c0_12 = arith.constant 0 : index
    %15 = vector.load %arg6[%c0_11, %c0_12] : memref<16x128xbf16, #tpu.memory_space<vmem>>, vector<16x128xbf16>
    tpu.vector_store %arg6[%c0_11, %c0_12], %14 {strides = array<i32>} : memref<16x128xbf16, #tpu.memory_space<vmem>>, vector<16x128xbf16>,
    return
  }
  func.func @transform_0(%arg0: i32) -> (i32, i32) {
    %c0_i32 = arith.constant 0 : i32
    %c0_i32_0 = arith.constant 0 : i32
    return %arg0, %c0_i32 : i32, i32
  }
  func.func @transform_1(%arg0: i32) -> (i32, i32) {
    %c0_i32 = arith.constant 0 : i32
    %c0_i32_0 = arith.constant 0 : i32
    %c0_i32_1 = arith.constant 0 : i32
    return %c0_i32, %c0_i32_0 : i32, i32
  }
  func.func @transform_2(%arg0: i32) -> (i32, i32) {
    %c0_i32 = arith.constant 0 : i32
    %c0_i32_0 = arith.constant 0 : i32
    %c0_i32_1 = arith.constant 0 : i32
    return %c0_i32, %c0_i32_0 : i32, i32
  }
  func.func @transform_3(%arg0: i32) -> (i32, i32) {
    %c0_i32 = arith.constant 0 : i32
    %c0_i32_0 = arith.constant 0 : i32
    %c0_i32_1 = arith.constant 0 : i32
    return %c0_i32, %c0_i32_0 : i32, i32
  }
  func.func @transform_4(%arg0: i32) -> (i32, i32) {
    %c0_i32 = arith.constant 0 : i32
    %c0_i32_0 = arith.constant 0 : i32
    %c0_i32_1 = arith.constant 0 : i32
    return %c0_i32, %c0_i32_0 : i32, i32
  }
  func.func @transform_5(%arg0: i32) -> (i32, i32) {
    %c0_i32 = arith.constant 0 : i32
    %c0_i32_0 = arith.constant 0 : i32
    return %arg0, %c0_i32 : i32, i32
  }
}

</mosaic_0001>

<llo_original>
// kernel: discriminator_forward.1
$region0: #{discriminator_forward.1}
  #allocation0 [shape = 'u32[]', space=smem, size = 0x4, offset = 0x4, fixed_abs, tag = 'smem constant byte address 0x4 - core index']
  #allocation1 [shape = 'u32[144,128]{1,0:T(1,128)}', space=vmem, size = 0x12000, scoped, tag = 'internal scratch']
  %s0 = inlined_call_operand.hbm [shape: bf16[8,512], index: 0, kind: input, shape index: {}]
  %s1 = inlined_call_operand.hbm [shape: bf16[512,512], index: 1, kind: input, shape index: {}]
  %s2 = inlined_call_operand.hbm [shape: f32[1,512], index: 2, kind: input, shape index: {}]
  %s3 = inlined_call_operand.hbm [shape: bf16[512,128], index: 3, kind: input, shape index: {}]
  %s4 = inlined_call_operand.vmem [shape: f32[1,128], index: 4, kind: input, shape index: {}]
  %s5 = inlined_call_operand.vmem [shape: bf16[8,128], index: 5, kind: output, shape index: {}]
  %s6 = sld [smem:[#allocation0]]
  $region76: #{discriminator_forward.1} parent=0
    _
  %s8 = ssub.s32 1, %s6
  %s9 = scalar_select 0, %s8, %s6
  $region1: #{discriminator_forward.1} parent=0
    #allocation2 [shape = 'u8[16384]{0}', space=vmem, size = 0x4000, scoped, tag = 'input window, operand 0, single buffered']
    #allocation3 [shape = 's32[1]{0}', space=sflag, size = 0x4, scoped, tag = 'scoped memory for discriminator_forward.1']
    #allocation4 [shape = 'u8[524288]{0}', space=vmem, size = 0x80000, scoped, tag = 'input window, operand 1, single buffered']
    #allocation5 [shape = 's32[1]{0}', space=sflag, size = 0x4, scoped, tag = 'scoped memory for discriminator_forward.1']
    #allocation6 [shape = 'u8[2048]{0}', space=vmem, size = 0x800, scoped, tag = 'input window, operand 2, single buffered']
    #allocation7 [shape = 'u8[131072]{0}', space=vmem, size = 0x20000, scoped, tag = 'input window, operand 3, single buffered']
    #allocation8 [shape = 's32[1]{0}', space=sflag, size = 0x4, scoped, tag = 'scoped memory for discriminator_forward.1']
    #allocation9 [shape = 'u8[4096]{0}', space=vmem, size = 0x1000, scoped, tag = 'output window, operand 0, single buffered']
    %10 = vsyncpa [#allocation3], 0
    %11 = vsyncpa [#allocation5], 0
    %12 = vsyncpa [#allocation8], 0
    // Predicated region
    $region2: #{discriminator_forward.1} parent=1 // pred_check
      _
    $region3: #{discriminator_forward.1} parent=1 // pred_check_branch
      %14 = sbr.rel (0) target = $region5
    $region4: #{discriminator_forward.1} parent=1 // pred_region
      %s16 = ssub.s32 512, 256
      %17 = vsyncadd [#allocation3], %s16
      %s18 = sshll.u32 [#allocation2], 4
      %s19 = int_to_ptr.vmem [resolvable:$true] %s18
      %24 = dma.hbm_to_vmem [thread:$0]  %s0, 256, %s19, [#allocation3], 256, 256, 16
    $region5: #{discriminator_forward.1} parent=1 // pred_fallthru
      _
    // Predicated region
    $region6: #{discriminator_forward.1} parent=1 // pred_check
      _
    $region7: #{discriminator_forward.1} parent=1 // pred_check_branch
      %26 = sbr.rel (0) target = $region9
    $region8: #{discriminator_forward.1} parent=1 // pred_region
      %s28 = ssub.s32 16384, 16384
      %29 = vsyncadd [#allocation5], %s28
      %s30 = sshll.u32 [#allocation4], 4
      %s31 = int_to_ptr.vmem [resolvable:$true] %s30
      %36 = dma.hbm_to_vmem [thread:$0]  %s1, 16384, %s31, [#allocation5], 256, 256, 16
    $region9: #{discriminator_forward.1} parent=1 // pred_fallthru
      _
    // Predicated region
    $region10: #{discriminator_forward.1} parent=1 // pred_check
      _
    $region11: #{discriminator_forward.1} parent=1 // pred_check_branch
      %38 = sbr.rel (0) target = $region13
    $region12: #{discriminator_forward.1} parent=1 // pred_region
      %s40 = ssub.s32 64, 64
      %41 = vsyncadd [#allocation5], %s40
      %s43 = sshll.u32 [#allocation6], 4
      %s44 = int_to_ptr.vmem [resolvable:$true] %s43
      %46 = dma.hbm_to_vmem [thread:$0]  %s2, 64, %s44, [#allocation5]
    $region13: #{discriminator_forward.1} parent=1 // pred_fallthru
      _
    // Predicated region
    $region14: #{discriminator_forward.1} parent=1 // pred_check
      _
    $region15: #{discriminator_forward.1} parent=1 // pred_check_branch
      %48 = sbr.rel (0) target = $region17
    $region16: #{discriminator_forward.1} parent=1 // pred_region
      %s50 = ssub.s32 4096, 4096
      %51 = vsyncadd [#allocation8], %s50
      %s52 = sshll.u32 [#allocation7], 4
      %s53 = int_to_ptr.vmem [resolvable:$true] %s52
      %58 = dma.hbm_to_vmem [thread:$0]  %s3, 4096, %s53, [#allocation8], 64, 64, 4
    $region17: #{discriminator_forward.1} parent=1 // pred_fallthru
      _
    // Predicated region
    $region18: #{discriminator_forward.1} parent=1 // pred_check
      _
    $region19: #{discriminator_forward.1} parent=1 // pred_check_branch
      %60 = sbr.rel (0) target = $region21
    $region20: #{discriminator_forward.1} parent=1 // pred_region
      _
    $region21: #{discriminator_forward.1} parent=1 // pred_fallthru
      _
    // Predicated region
    $region22: #{discriminator_forward.1} parent=1 // pred_check
      _
    $region23: #{discriminator_forward.1} parent=1 // pred_check_branch
      %62 = sbr.rel (0) target = $region25
    $region24: #{discriminator_forward.1} parent=1 // pred_region
      %63 = dma.done [#allocation3], 512
    $region25: #{discriminator_forward.1} parent=1 // pred_fallthru
      _
    // Predicated region
    $region26: #{discriminator_forward.1} parent=1 // pred_check
      _
    $region27: #{discriminator_forward.1} parent=1 // pred_check_branch
      %65 = sbr.rel (0) target = $region29
    $region28: #{discriminator_forward.1} parent=1 // pred_region
      %66 = dma.done [#allocation5], 16384
    $region29: #{discriminator_forward.1} parent=1 // pred_fallthru
      _
    // Predicated region
    $region30: #{discriminator_forward.1} parent=1 // pred_check
      _
    $region31: #{discriminator_forward.1} parent=1 // pred_check_branch
      %68 = sbr.rel (0) target = $region33
    $region32: #{discriminator_forward.1} parent=1 // pred_region
      %69 = dma.done [#allocation5], 64
    $region33: #{discriminator_forward.1} parent=1 // pred_fallthru
      _
    // Predicated region
    $region34: #{discriminator_forward.1} parent=1 // pred_check
      _
    $region35: #{discriminator_forward.1} parent=1 // pred_check_branch
      %71 = sbr.rel (0) target = $region37
    $region36: #{discriminator_forward.1} parent=1 // pred_region
      %72 = dma.done [#allocation8], 4096
    $region37: #{discriminator_forward.1} parent=1 // pred_fallthru
      _
    %v74 = vld [vmem:[#allocation2] sm:$0xff]
    %v75 = vld [vmem:[#allocation2 + $0x8] sm:$0xff]
    %v76 = vld [vmem:[#allocation2 + $0x10] sm:$0xff]
    %v77 = vld [vmem:[#allocation2 + $0x18] sm:$0xff]
    %v78 = vld [vmem:[#allocation4] sm:$0xff]
    %v79 = vld [vmem:[#allocation4 + $0x8] sm:$0xff]
    %v80 = vld [vmem:[#allocation4 + $0x10] sm:$0xff]
    %v81 = vld [vmem:[#allocation4 + $0x18] sm:$0xff]
    %v82 = vld [vmem:[#allocation4 + $0x20] sm:$0xff]
    %v83 = vld [vmem:[#allocation4 + $0x28] sm:$0xff]
    %v84 = vld [vmem:[#allocation4 + $0x30] sm:$0xff]
    %v85 = vld [vmem:[#allocation4 + $0x38] sm:$0xff]
    %v86 = vld [vmem:[#allocation4 + $0x40] sm:$0xff]
    %v87 = vld [vmem:[#allocation4 + $0x48] sm:$0xff]
    %v88 = vld [vmem:[#allocation4 + $0x50] sm:$0xff]
    %v89 = vld [vmem:[#allocation4 + $0x58] sm:$0xff]
    %v90 = vld [vmem:[#allocation4 + $0x60] sm:$0xff]
    %v91 = vld [vmem:[#allocation4 + $0x68] sm:$0xff]
    %v92 = vld [vmem:[#allocation4 + $0x70] sm:$0xff]
    %v93 = vld [vmem:[#allocation4 + $0x78] sm:$0xff]
    %v94 = vld [vmem:[#allocation4 + $0x80] sm:$0xff]
    %v95 = vld [vmem:[#allocation4 + $0x88] sm:$0xff]
    %v96 = vld [vmem:[#allocation4 + $0x90] sm:$0xff]
    %v97 = vld [vmem:[#allocation4 + $0x98] sm:$0xff]
    %v98 = vld [vmem:[#allocation4 + $0xa0] sm:$0xff]
    %v99 = vld [vmem:[#allocation4 + $0xa8] sm:$0xff]
    %v100 = vld [vmem:[#allocation4 + $0xb0] sm:$0xff]
    %v101 = vld [vmem:[#allocation4 + $0xb8] sm:$0xff]
    %v102 = vld [vmem:[#allocation4 + $0xc0] sm:$0xff]
    %v103 = vld [vmem:[#allocation4 + $0xc8] sm:$0xff]
    %v104 = vld [vmem:[#allocation4 + $0xd0] sm:$0xff]
    %v105 = vld [vmem:[#allocation4 + $0xd8] sm:$0xff]
    %v106 = vld [vmem:[#allocation4 + $0xe0] sm:$0xff]
    %v107 = vld [vmem:[#allocation4 + $0xe8] sm:$0xff]
    %v108 = vld [vmem:[#allocation4 + $0xf0] sm:$0xff]
    %v109 = vld [vmem:[#allocation4 + $0xf8] sm:$0xff]
    %v110 = vld [vmem:[#allocation4 + $0x100] sm:$0xff]
    %v111 = vld [vmem:[#allocation4 + $0x108] sm:$0xff]
    %v112 = vld [vmem:[#allocation4 + $0x110] sm:$0xff]
    %v113 = vld [vmem:[#allocation4 + $0x118] sm:$0xff]
    %v114 = vld [vmem:[#allocation4 + $0x120] sm:$0xff]
    %v115 = vld [vmem:[#allocation4 + $0x128] sm:$0xff]
    %v116 = vld [vmem:[#allocation4 + $0x130] sm:$0xff]
    %v117 = vld [vmem:[#allocation4 + $0x138] sm:$0xff]
    %v118 = vld [vmem:[#allocation4 + $0x140] sm:$0xff]
    %v119 = vld [vmem:[#allocation4 + $0x148] sm:$0xff]
    %v120 = vld [vmem:[#allocation4 + $0x150] sm:$0xff]
    %v121 = vld [vmem:[#allocation4 + $0x158] sm:$0xff]
    %v122 = vld [vmem:[#allocation4 + $0x160] sm:$0xff]
    %v123 = vld [vmem:[#allocation4 + $0x168] sm:$0xff]
    %v124 = vld [vmem:[#allocation4 + $0x170] sm:$0xff]
    %v125 = vld [vmem:[#allocation4 + $0x178] sm:$0xff]
    %v126 = vld [vmem:[#allocation4 + $0x180] sm:$0xff]
    %v127 = vld [vmem:[#allocation4 + $0x188] sm:$0xff]
    %v128 = vld [vmem:[#allocation4 + $0x190] sm:$0xff]
    %v129 = vld [vmem:[#allocation4 + $0x198] sm:$0xff]
    %v130 = vld [vmem:[#allocation4 + $0x1a0] sm:$0xff]
    %v131 = vld [vmem:[#allocation4 + $0x1a8] sm:$0xff]
    %v132 = vld [vmem:[#allocation4 + $0x1b0] sm:$0xff]
    %v133 = vld [vmem:[#allocation4 + $0x1b8] sm:$0xff]
    %v134 = vld [vmem:[#allocation4 + $0x1c0] sm:$0xff]
    %v135 = vld [vmem:[#allocation4 + $0x1c8] sm:$0xff]
    %v136 = vld [vmem:[#allocation4 + $0x1d0] sm:$0xff]
    %v137 = vld [vmem:[#allocation4 + $0x1d8] sm:$0xff]
    %v138 = vld [vmem:[#allocation4 + $0x1e0] sm:$0xff]
    %v139 = vld [vmem:[#allocation4 + $0x1e8] sm:$0xff]
    %v140 = vld [vmem:[#allocation4 + $0x1f0] sm:$0xff]
    %v141 = vld [vmem:[#allocation4 + $0x1f8] sm:$0xff]
    %v142 = vld [vmem:[#allocation4 + $0x200] sm:$0xff]
    %v143 = vld [vmem:[#allocation4 + $0x208] sm:$0xff]
    %v144 = vld [vmem:[#allocation4 + $0x210] sm:$0xff]
    %v145 = vld [vmem:[#allocation4 + $0x218] sm:$0xff]
    %v146 = vld [vmem:[#allocation4 + $0x220] sm:$0xff]
    %v147 = vld [vmem:[#allocation4 + $0x228] sm:$0xff]
    %v148 = vld [vmem:[#allocation4 + $0x230] sm:$0xff]
    %v149 = vld [vmem:[#allocation4 + $0x238] sm:$0xff]
    %v150 = vld [vmem:[#allocation4 + $0x240] sm:$0xff]
    %v151 = vld [vmem:[#allocation4 + $0x248] sm:$0xff]
    %v152 = vld [vmem:[#allocation4 + $0x250] sm:$0xff]
    %v153 = vld [vmem:[#allocation4 + $0x258] sm:$0xff]
    %v154 = vld [vmem:[#allocation4 + $0x260] sm:$0xff]
    %v155 = vld [vmem:[#allocation4 + $0x268] sm:$0xff]
    %v156 = vld [vmem:[#allocation4 + $0x270] sm:$0xff]
    %v157 = vld [vmem:[#allocation4 + $0x278] sm:$0xff]
    %v158 = vld [vmem:[#allocation4 + $0x280] sm:$0xff]
    %v159 = vld [vmem:[#allocation4 + $0x288] sm:$0xff]
    %v160 = vld [vmem:[#allocation4 + $0x290] sm:$0xff]
    %v161 = vld [vmem:[#allocation4 + $0x298] sm:$0xff]
    %v162 = vld [vmem:[#allocation4 + $0x2a0] sm:$0xff]
    %v163 = vld [vmem:[#allocation4 + $0x2a8] sm:$0xff]
    %v164 = vld [vmem:[#allocation4 + $0x2b0] sm:$0xff]
    %v165 = vld [vmem:[#allocation4 + $0x2b8] sm:$0xff]
    %v166 = vld [vmem:[#allocation4 + $0x2c0] sm:$0xff]
    %v167 = vld [vmem:[#allocation4 + $0x2c8] sm:$0xff]
    %v168 = vld [vmem:[#allocation4 + $0x2d0] sm:$0xff]
    %v169 = vld [vmem:[#allocation4 + $0x2d8] sm:$0xff]
    %v170 = vld [vmem:[#allocation4 + $0x2e0] sm:$0xff]
    %v171 = vld [vmem:[#allocation4 + $0x2e8] sm:$0xff]
    %v172 = vld [vmem:[#allocation4 + $0x2f0] sm:$0xff]
    %v173 = vld [vmem:[#allocation4 + $0x2f8] sm:$0xff]
    %v174 = vld [vmem:[#allocation4 + $0x300] sm:$0xff]
    %v175 = vld [vmem:[#allocation4 + $0x308] sm:$0xff]
    %v176 = vld [vmem:[#allocation4 + $0x310] sm:$0xff]
    %v177 = vld [vmem:[#allocation4 + $0x318] sm:$0xff]
    %v178 = vld [vmem:[#allocation4 + $0x320] sm:$0xff]
    %v179 = vld [vmem:[#allocation4 + $0x328] sm:$0xff]
    %v180 = vld [vmem:[#allocation4 + $0x330] sm:$0xff]
    %v181 = vld [vmem:[#allocation4 + $0x338] sm:$0xff]
    %v182 = vld [vmem:[#allocation4 + $0x340] sm:$0xff]
    %v183 = vld [vmem:[#allocation4 + $0x348] sm:$0xff]
    %v184 = vld [vmem:[#allocation4 + $0x350] sm:$0xff]
    %v185 = vld [vmem:[#allocation4 + $0x358] sm:$0xff]
    %v186 = vld [vmem:[#allocation4 + $0x360] sm:$0xff]
    %v187 = vld [vmem:[#allocation4 + $0x368] sm:$0xff]
    %v188 = vld [vmem:[#allocation4 + $0x370] sm:$0xff]
    %v189 = vld [vmem:[#allocation4 + $0x378] sm:$0xff]
    %v190 = vld [vmem:[#allocation4 + $0x380] sm:$0xff]
    %v191 = vld [vmem:[#allocation4 + $0x388] sm:$0xff]
    %v192 = vld [vmem:[#allocation4 + $0x390] sm:$0xff]
    %v193 = vld [vmem:[#allocation4 + $0x398] sm:$0xff]
    %v194 = vld [vmem:[#allocation4 + $0x3a0] sm:$0xff]
    %v195 = vld [vmem:[#allocation4 + $0x3a8] sm:$0xff]
    %v196 = vld [vmem:[#allocation4 + $0x3b0] sm:$0xff]
    %v197 = vld [vmem:[#allocation4 + $0x3b8] sm:$0xff]
    %v198 = vld [vmem:[#allocation4 + $0x3c0] sm:$0xff]
    %v199 = vld [vmem:[#allocation4 + $0x3c8] sm:$0xff]
    %v200 = vld [vmem:[#allocation4 + $0x3d0] sm:$0xff]
    %v201 = vld [vmem:[#allocation4 + $0x3d8] sm:$0xff]
    %v202 = vld [vmem:[#allocation4 + $0x3e0] sm:$0xff]
    %v203 = vld [vmem:[#allocation4 + $0x3e8] sm:$0xff]
    %v204 = vld [vmem:[#allocation4 + $0x3f0] sm:$0xff]
    %v205 = vld [vmem:[#allocation4 + $0x3f8] sm:$0xff]
    %v206 = vld [vmem:[#allocation6] sm:$0xf]
    %v208 = vlaneseq
    %v209 = vshrl.u32 %v208, 7
    %v210 = vsub.s32 0, %v209
    %v211 = vrot.slane %v206, %v210
    %v212 = vlaneseq
    %v213 = vshrl.u32 %v212, 7
    %v214 = vsub.s32 1, %v213
    %v215 = vrot.slane %v206, %v214
    %v216 = vlaneseq
    %v217 = vshrl.u32 %v216, 7
    %v218 = vsub.s32 2, %v217
    %v219 = vrot.slane %v206, %v218
    %v220 = vlaneseq
    %v221 = vshrl.u32 %v220, 7
    %v222 = vsub.s32 3, %v221
    %v223 = vrot.slane %v206, %v222
    %v232 = vunpack.c.l.b16 %v74
    %v233 = vunpack.c.h.b16 %v74
    %v234 = vunpack.c.l.b16 %v75
    %v235 = vunpack.c.h.b16 %v75
    %v236 = vunpack.c.l.b16 %v76
    %v237 = vunpack.c.h.b16 %v76
    %v238 = vunpack.c.l.b16 %v77
    %v239 = vunpack.c.h.b16 %v77
    %v240 = vpack.c.b16 %v236, %v232
    %v241 = vpack.c.b16 %v237, %v233
    %v242 = vpack.c.b16 %v238, %v234
    %v243 = vpack.c.b16 %v239, %v235
    %v376 = vunpack.c.l.b16 %v78
    %v377 = vunpack.c.h.b16 %v78
    %v378 = vunpack.c.l.b16 %v79
    %v379 = vunpack.c.h.b16 %v79
    %v380 = vunpack.c.l.b16 %v80
    %v381 = vunpack.c.h.b16 %v80
    %v382 = vunpack.c.l.b16 %v81
    %v383 = vunpack.c.h.b16 %v81
    %v384 = vunpack.c.l.b16 %v82
    %v385 = vunpack.c.h.b16 %v82
    %v386 = vunpack.c.l.b16 %v83
    %v387 = vunpack.c.h.b16 %v83
    %v388 = vunpack.c.l.b16 %v84
    %v389 = vunpack.c.h.b16 %v84
    %v390 = vunpack.c.l.b16 %v85
    %v391 = vunpack.c.h.b16 %v85
    %v392 = vunpack.c.l.b16 %v86
    %v393 = vunpack.c.h.b16 %v86
    %v394 = vunpack.c.l.b16 %v87
    %v395 = vunpack.c.h.b16 %v87
    %v396 = vunpack.c.l.b16 %v88
    %v397 = vunpack.c.h.b16 %v88
    %v398 = vunpack.c.l.b16 %v89
    %v399 = vunpack.c.h.b16 %v89
    %v400 = vunpack.c.l.b16 %v90
    %v401 = vunpack.c.h.b16 %v90
    %v402 = vunpack.c.l.b16 %v91
    %v403 = vunpack.c.h.b16 %v91
    %v404 = vunpack.c.l.b16 %v92
    %v405 = vunpack.c.h.b16 %v92
    %v406 = vunpack.c.l.b16 %v93
    %v407 = vunpack.c.h.b16 %v93
    %v408 = vunpack.c.l.b16 %v94
    %v409 = vunpack.c.h.b16 %v94
    %v410 = vunpack.c.l.b16 %v95
    %v411 = vunpack.c.h.b16 %v95
    %v412 = vunpack.c.l.b16 %v96
    %v413 = vunpack.c.h.b16 %v96
    %v414 = vunpack.c.l.b16 %v97
    %v415 = vunpack.c.h.b16 %v97
    %v416 = vunpack.c.l.b16 %v98
    %v417 = vunpack.c.h.b16 %v98
    %v418 = vunpack.c.l.b16 %v99
    %v419 = vunpack.c.h.b16 %v99
    %v420 = vunpack.c.l.b16 %v100
    %v421 = vunpack.c.h.b16 %v100
    %v422 = vunpack.c.l.b16 %v101
    %v423 = vunpack.c.h.b16 %v101
    %v424 = vunpack.c.l.b16 %v102
    %v425 = vunpack.c.h.b16 %v102
    %v426 = vunpack.c.l.b16 %v103
    %v427 = vunpack.c.h.b16 %v103
    %v428 = vunpack.c.l.b16 %v104
    %v429 = vunpack.c.h.b16 %v104
    %v430 = vunpack.c.l.b16 %v105
    %v431 = vunpack.c.h.b16 %v105
    %v432 = vunpack.c.l.b16 %v106
    %v433 = vunpack.c.h.b16 %v106
    %v434 = vunpack.c.l.b16 %v107
    %v435 = vunpack.c.h.b16 %v107
    %v436 = vunpack.c.l.b16 %v108
    %v437 = vunpack.c.h.b16 %v108
    %v438 = vunpack.c.l.b16 %v109
    %v439 = vunpack.c.h.b16 %v109
    %v440 = vunpack.c.l.b16 %v110
    %v441 = vunpack.c.h.b16 %v110
    %v442 = vunpack.c.l.b16 %v111
    %v443 = vunpack.c.h.b16 %v111
    %v444 = vunpack.c.l.b16 %v112
    %v445 = vunpack.c.h.b16 %v112
    %v446 = vunpack.c.l.b16 %v113
    %v447 = vunpack.c.h.b16 %v113
    %v448 = vunpack.c.l.b16 %v114
    %v449 = vunpack.c.h.b16 %v114
    %v450 = vunpack.c.l.b16 %v115
    %v451 = vunpack.c.h.b16 %v115
    %v452 = vunpack.c.l.b16 %v116
    %v453 = vunpack.c.h.b16 %v116
    %v454 = vunpack.c.l.b16 %v117
    %v455 = vunpack.c.h.b16 %v117
    %v456 = vunpack.c.l.b16 %v118
    %v457 = vunpack.c.h.b16 %v118
    %v458 = vunpack.c.l.b16 %v119
    %v459 = vunpack.c.h.b16 %v119
    %v460 = vunpack.c.l.b16 %v120
    %v461 = vunpack.c.h.b16 %v120
    %v462 = vunpack.c.l.b16 %v121
    %v463 = vunpack.c.h.b16 %v121
    %v464 = vunpack.c.l.b16 %v122
    %v465 = vunpack.c.h.b16 %v122
    %v466 = vunpack.c.l.b16 %v123
    %v467 = vunpack.c.h.b16 %v123
    %v468 = vunpack.c.l.b16 %v124
    %v469 = vunpack.c.h.b16 %v124
    %v470 = vunpack.c.l.b16 %v125
    %v471 = vunpack.c.h.b16 %v125
    %v472 = vunpack.c.l.b16 %v126
    %v473 = vunpack.c.h.b16 %v126
    %v474 = vunpack.c.l.b16 %v127
    %v475 = vunpack.c.h.b16 %v127
    %v476 = vunpack.c.l.b16 %v128
    %v477 = vunpack.c.h.b16 %v128
    %v478 = vunpack.c.l.b16 %v129
    %v479 = vunpack.c.h.b16 %v129
    %v480 = vunpack.c.l.b16 %v130
    %v481 = vunpack.c.h.b16 %v130
    %v482 = vunpack.c.l.b16 %v131
    %v483 = vunpack.c.h.b16 %v131
    %v484 = vunpack.c.l.b16 %v132
    %v485 = vunpack.c.h.b16 %v132
    %v486 = vunpack.c.l.b16 %v133
    %v487 = vunpack.c.h.b16 %v133
    %v488 = vunpack.c.l.b16 %v134
    %v489 = vunpack.c.h.b16 %v134
    %v490 = vunpack.c.l.b16 %v135
    %v491 = vunpack.c.h.b16 %v135
    %v492 = vunpack.c.l.b16 %v136
    %v493 = vunpack.c.h.b16 %v136
    %v494 = vunpack.c.l.b16 %v137
    %v495 = vunpack.c.h.b16 %v137
    %v496 = vunpack.c.l.b16 %v138
    %v497 = vunpack.c.h.b16 %v138
    %v498 = vunpack.c.l.b16 %v139
    %v499 = vunpack.c.h.b16 %v139
    %v500 = vunpack.c.l.b16 %v140
    %v501 = vunpack.c.h.b16 %v140
    %v502 = vunpack.c.l.b16 %v141
    %v503 = vunpack.c.h.b16 %v141
    %v504 = vunpack.c.l.b16 %v142
    %v505 = vunpack.c.h.b16 %v142
    %v506 = vunpack.c.l.b16 %v143
    %v507 = vunpack.c.h.b16 %v143
    %v508 = vunpack.c.l.b16 %v144
    %v509 = vunpack.c.h.b16 %v144
    %v510 = vunpack.c.l.b16 %v145
    %v511 = vunpack.c.h.b16 %v145
    %v512 = vunpack.c.l.b16 %v146
    %v513 = vunpack.c.h.b16 %v146
    %v514 = vunpack.c.l.b16 %v147
    %v515 = vunpack.c.h.b16 %v147
    %v516 = vunpack.c.l.b16 %v148
    %v517 = vunpack.c.h.b16 %v148
    %v518 = vunpack.c.l.b16 %v149
    %v519 = vunpack.c.h.b16 %v149
    %v520 = vunpack.c.l.b16 %v150
    %v521 = vunpack.c.h.b16 %v150
    %v522 = vunpack.c.l.b16 %v151
    %v523 = vunpack.c.h.b16 %v151
    %v524 = vunpack.c.l.b16 %v152
    %v525 = vunpack.c.h.b16 %v152
    %v526 = vunpack.c.l.b16 %v153
    %v527 = vunpack.c.h.b16 %v153
    %v528 = vunpack.c.l.b16 %v154
    %v529 = vunpack.c.h.b16 %v154
    %v530 = vunpack.c.l.b16 %v155
    %v531 = vunpack.c.h.b16 %v155
    %v532 = vunpack.c.l.b16 %v156
    %v533 = vunpack.c.h.b16 %v156
    %v534 = vunpack.c.l.b16 %v157
    %v535 = vunpack.c.h.b16 %v157
    %v536 = vunpack.c.l.b16 %v158
    %v537 = vunpack.c.h.b16 %v158
    %v538 = vunpack.c.l.b16 %v159
    %v539 = vunpack.c.h.b16 %v159
    %v540 = vunpack.c.l.b16 %v160
    %v541 = vunpack.c.h.b16 %v160
    %v542 = vunpack.c.l.b16 %v161
    %v543 = vunpack.c.h.b16 %v161
    %v544 = vunpack.c.l.b16 %v162
    %v545 = vunpack.c.h.b16 %v162
    %v546 = vunpack.c.l.b16 %v163
    %v547 = vunpack.c.h.b16 %v163
    %v548 = vunpack.c.l.b16 %v164
    %v549 = vunpack.c.h.b16 %v164
    %v550 = vunpack.c.l.b16 %v165
    %v551 = vunpack.c.h.b16 %v165
    %v552 = vunpack.c.l.b16 %v166
    %v553 = vunpack.c.h.b16 %v166
    %v554 = vunpack.c.l.b16 %v167
    %v555 = vunpack.c.h.b16 %v167
    %v556 = vunpack.c.l.b16 %v168
    %v557 = vunpack.c.h.b16 %v168
    %v558 = vunpack.c.l.b16 %v169
    %v559 = vunpack.c.h.b16 %v169
    %v560 = vunpack.c.l.b16 %v170
    %v561 = vunpack.c.h.b16 %v170
    %v562 = vunpack.c.l.b16 %v171
    %v563 = vunpack.c.h.b16 %v171
    %v564 = vunpack.c.l.b16 %v172
    %v565 = vunpack.c.h.b16 %v172
    %v566 = vunpack.c.l.b16 %v173
    %v567 = vunpack.c.h.b16 %v173
    %v568 = vunpack.c.l.b16 %v174
    %v569 = vunpack.c.h.b16 %v174
    %v570 = vunpack.c.l.b16 %v175
    %v571 = vunpack.c.h.b16 %v175
    %v572 = vunpack.c.l.b16 %v176
    %v573 = vunpack.c.h.b16 %v176
    %v574 = vunpack.c.l.b16 %v177
    %v575 = vunpack.c.h.b16 %v177
    %v576 = vunpack.c.l.b16 %v178
    %v577 = vunpack.c.h.b16 %v178
    %v578 = vunpack.c.l.b16 %v179
    %v579 = vunpack.c.h.b16 %v179
    %v580 = vunpack.c.l.b16 %v180
    %v581 = vunpack.c.h.b16 %v180
    %v582 = vunpack.c.l.b16 %v181
    %v583 = vunpack.c.h.b16 %v181
    %v584 = vunpack.c.l.b16 %v182
    %v585 = vunpack.c.h.b16 %v182
    %v586 = vunpack.c.l.b16 %v183
    %v587 = vunpack.c.h.b16 %v183
    %v588 = vunpack.c.l.b16 %v184
    %v589 = vunpack.c.h.b16 %v184
    %v590 = vunpack.c.l.b16 %v185
    %v591 = vunpack.c.h.b16 %v185
    %v592 = vunpack.c.l.b16 %v186
    %v593 = vunpack.c.h.b16 %v186
    %v594 = vunpack.c.l.b16 %v187
    %v595 = vunpack.c.h.b16 %v187
    %v596 = vunpack.c.l.b16 %v188
    %v597 = vunpack.c.h.b16 %v188
    %v598 = vunpack.c.l.b16 %v189
    %v599 = vunpack.c.h.b16 %v189
    %v600 = vunpack.c.l.b16 %v190
    %v601 = vunpack.c.h.b16 %v190
    %v602 = vunpack.c.l.b16 %v191
    %v603 = vunpack.c.h.b16 %v191
    %v604 = vunpack.c.l.b16 %v192
    %v605 = vunpack.c.h.b16 %v192
    %v606 = vunpack.c.l.b16 %v193
    %v607 = vunpack.c.h.b16 %v193
    %v608 = vunpack.c.l.b16 %v194
    %v609 = vunpack.c.h.b16 %v194
    %v610 = vunpack.c.l.b16 %v195
    %v611 = vunpack.c.h.b16 %v195
    %v612 = vunpack.c.l.b16 %v196
    %v613 = vunpack.c.h.b16 %v196
    %v614 = vunpack.c.l.b16 %v197
    %v615 = vunpack.c.h.b16 %v197
    %v616 = vunpack.c.l.b16 %v198
    %v617 = vunpack.c.h.b16 %v198
    %v618 = vunpack.c.l.b16 %v199
    %v619 = vunpack.c.h.b16 %v199
    %v620 = vunpack.c.l.b16 %v200
    %v621 = vunpack.c.h.b16 %v200
    %v622 = vunpack.c.l.b16 %v201
    %v623 = vunpack.c.h.b16 %v201
    %v624 = vunpack.c.l.b16 %v202
    %v625 = vunpack.c.h.b16 %v202
    %v626 = vunpack.c.l.b16 %v203
    %v627 = vunpack.c.h.b16 %v203
    %v628 = vunpack.c.l.b16 %v204
    %v629 = vunpack.c.h.b16 %v204
    %v630 = vunpack.c.l.b16 %v205
    %v631 = vunpack.c.h.b16 %v205
    %v632 = vpack.c.b16 %v380, %v376
    %v633 = vpack.c.b16 %v381, %v377
    %v634 = vpack.c.b16 %v382, %v378
    %v635 = vpack.c.b16 %v383, %v379
    %v636 = vpack.c.b16 %v388, %v384
    %v637 = vpack.c.b16 %v389, %v385
    %v638 = vpack.c.b16 %v390, %v386
    %v639 = vpack.c.b16 %v391, %v387
    %v640 = vpack.c.b16 %v396, %v392
    %v641 = vpack.c.b16 %v397, %v393
    %v642 = vpack.c.b16 %v398, %v394
    %v643 = vpack.c.b16 %v399, %v395
    %v644 = vpack.c.b16 %v404, %v400
    %v645 = vpack.c.b16 %v405, %v401
    %v646 = vpack.c.b16 %v406, %v402
    %v647 = vpack.c.b16 %v407, %v403
    %v648 = vpack.c.b16 %v412, %v408
    %v649 = vpack.c.b16 %v413, %v409
    %v650 = vpack.c.b16 %v414, %v410
    %v651 = vpack.c.b16 %v415, %v411
    %v652 = vpack.c.b16 %v420, %v416
    %v653 = vpack.c.b16 %v421, %v417
    %v654 = vpack.c.b16 %v422, %v418
    %v655 = vpack.c.b16 %v423, %v419
    %v656 = vpack.c.b16 %v428, %v424
    %v657 = vpack.c.b16 %v429, %v425
    %v658 = vpack.c.b16 %v430, %v426
    %v659 = vpack.c.b16 %v431, %v427
    %v660 = vpack.c.b16 %v436, %v432
    %v661 = vpack.c.b16 %v437, %v433
    %v662 = vpack.c.b16 %v438, %v434
    %v663 = vpack.c.b16 %v439, %v435
    %v664 = vpack.c.b16 %v444, %v440
    %v665 = vpack.c.b16 %v445, %v441
    %v666 = vpack.c.b16 %v446, %v442
    %v667 = vpack.c.b16 %v447, %v443
    %v668 = vpack.c.b16 %v452, %v448
    %v669 = vpack.c.b16 %v453, %v449
    %v670 = vpack.c.b16 %v454, %v450
    %v671 = vpack.c.b16 %v455, %v451
    %v672 = vpack.c.b16 %v460, %v456
    %v673 = vpack.c.b16 %v461, %v457
    %v674 = vpack.c.b16 %v462, %v458
    %v675 = vpack.c.b16 %v463, %v459
    %v676 = vpack.c.b16 %v468, %v464
    %v677 = vpack.c.b16 %v469, %v465
    %v678 = vpack.c.b16 %v470, %v466
    %v679 = vpack.c.b16 %v471, %v467
    %v680 = vpack.c.b16 %v476, %v472
    %v681 = vpack.c.b16 %v477, %v473
    %v682 = vpack.c.b16 %v478, %v474
    %v683 = vpack.c.b16 %v479, %v475
    %v684 = vpack.c.b16 %v484, %v480
    %v685 = vpack.c.b16 %v485, %v481
    %v686 = vpack.c.b16 %v486, %v482
    %v687 = vpack.c.b16 %v487, %v483
    %v688 = vpack.c.b16 %v492, %v488
    %v689 = vpack.c.b16 %v493, %v489
    %v690 = vpack.c.b16 %v494, %v490
    %v691 = vpack.c.b16 %v495, %v491
    %v692 = vpack.c.b16 %v500, %v496
    %v693 = vpack.c.b16 %v501, %v497
    %v694 = vpack.c.b16 %v502, %v498
    %v695 = vpack.c.b16 %v503, %v499
    %v696 = vpack.c.b16 %v508, %v504
    %v697 = vpack.c.b16 %v509, %v505
    %v698 = vpack.c.b16 %v510, %v506
    %v699 = vpack.c.b16 %v511, %v507
    %v700 = vpack.c.b16 %v516, %v512
    %v701 = vpack.c.b16 %v517, %v513
    %v702 = vpack.c.b16 %v518, %v514
    %v703 = vpack.c.b16 %v519, %v515
    %v704 = vpack.c.b16 %v524, %v520
    %v705 = vpack.c.b16 %v525, %v521
    %v706 = vpack.c.b16 %v526, %v522
    %v707 = vpack.c.b16 %v527, %v523
    %v708 = vpack.c.b16 %v532, %v528
    %v709 = vpack.c.b16 %v533, %v529
    %v710 = vpack.c.b16 %v534, %v530
    %v711 = vpack.c.b16 %v535, %v531
    %v712 = vpack.c.b16 %v540, %v536
    %v713 = vpack.c.b16 %v541, %v537
    %v714 = vpack.c.b16 %v542, %v538
    %v715 = vpack.c.b16 %v543, %v539
    %v716 = vpack.c.b16 %v548, %v544
    %v717 = vpack.c.b16 %v549, %v545
    %v718 = vpack.c.b16 %v550, %v546
    %v719 = vpack.c.b16 %v551, %v547
    %v720 = vpack.c.b16 %v556, %v552
    %v721 = vpack.c.b16 %v557, %v553
    %v722 = vpack.c.b16 %v558, %v554
    %v723 = vpack.c.b16 %v559, %v555
    %v724 = vpack.c.b16 %v564, %v560
    %v725 = vpack.c.b16 %v565, %v561
    %v726 = vpack.c.b16 %v566, %v562
    %v727 = vpack.c.b16 %v567, %v563
    %v728 = vpack.c.b16 %v572, %v568
    %v729 = vpack.c.b16 %v573, %v569
    %v730 = vpack.c.b16 %v574, %v570
    %v731 = vpack.c.b16 %v575, %v571
    %v732 = vpack.c.b16 %v580, %v576
    %v733 = vpack.c.b16 %v581, %v577
    %v734 = vpack.c.b16 %v582, %v578
    %v735 = vpack.c.b16 %v583, %v579
    %v736 = vpack.c.b16 %v588, %v584
    %v737 = vpack.c.b16 %v589, %v585
    %v738 = vpack.c.b16 %v590, %v586
    %v739 = vpack.c.b16 %v591, %v587
    %v740 = vpack.c.b16 %v596, %v592
    %v741 = vpack.c.b16 %v597, %v593
    %v742 = vpack.c.b16 %v598, %v594
    %v743 = vpack.c.b16 %v599, %v595
    %v744 = vpack.c.b16 %v604, %v600
    %v745 = vpack.c.b16 %v605, %v601
    %v746 = vpack.c.b16 %v606, %v602
    %v747 = vpack.c.b16 %v607, %v603
    %v748 = vpack.c.b16 %v612, %v608
    %v749 = vpack.c.b16 %v613, %v609
    %v750 = vpack.c.b16 %v614, %v610
    %v751 = vpack.c.b16 %v615, %v611
    %v752 = vpack.c.b16 %v620, %v616
    %v753 = vpack.c.b16 %v621, %v617
    %v754 = vpack.c.b16 %v622, %v618
    %v755 = vpack.c.b16 %v623, %v619
    %v756 = vpack.c.b16 %v628, %v624
    %v757 = vpack.c.b16 %v629, %v625
    %v758 = vpack.c.b16 %v630, %v626
    %v759 = vpack.c.b16 %v631, %v627
    %888 = vmatprep.subr.bf16.mxu0 %v661
    %889 = vmatpush1.bf16.msra.mxu0 %v660
    %890 = vmatprep.subr.bf16.mxu0 %v657
    %891 = vmatpush1.bf16.msra.mxu0 %v656
    %892 = vmatprep.subr.bf16.mxu0 %v653
    %893 = vmatpush1.bf16.msra.mxu0 %v652
    %894 = vmatprep.subr.bf16.mxu0 %v649
    %895 = vmatpush1.bf16.msra.mxu0 %v648
    %896 = vmatprep.subr.bf16.mxu0 %v645
    %897 = vmatpush1.bf16.msra.mxu0 %v644
    %898 = vmatprep.subr.bf16.mxu0 %v641
    %899 = vmatpush1.bf16.msra.mxu0 %v640
    %900 = vmatprep.subr.bf16.mxu0 %v637
    %901 = vmatpush1.bf16.msra.mxu0 %v636
    %902 = vmatprep.subr.bf16.mxu0 %v633
    %903 = vmatpush1.bf16.msra.mxu0 %v632
    %904 = vmatprep.subr.bf16.mxu0 %v693
    %905 = vmatpush2.bf16.msra.mxu0 %v692
    %906 = vmatprep.subr.bf16.mxu0 %v689
    %907 = vmatpush2.bf16.msra.mxu0 %v688
    %908 = vmatprep.subr.bf16.mxu0 %v685
    %909 = vmatpush2.bf16.msra.mxu0 %v684
    %910 = vmatprep.subr.bf16.mxu0 %v681
    %911 = vmatpush2.bf16.msra.mxu0 %v680
    %912 = vmatprep.subr.bf16.mxu0 %v677
    %913 = vmatpush2.bf16.msra.mxu0 %v676
    %914 = vmatprep.subr.bf16.mxu0 %v673
    %915 = vmatpush2.bf16.msra.mxu0 %v672
    %916 = vmatprep.subr.bf16.mxu0 %v669
    %917 = vmatpush2.bf16.msra.mxu0 %v668
    %918 = vmatprep.subr.bf16.mxu0 %v665
    %919 = vmatpush2.bf16.msra.mxu0 %v664
    %920 = vmatprep.mubr.bf16.mxu0 %v241
    %921 = vmatmul.mubr.bf16.gmra.mxu0 %v240
    %v922 = vpop.f32.mrf.mxu0
    %v923 = vadd.f32 %v211, %v922
    %v924 = vpop.f32.mrf.mxu0
    %v925 = vadd.f32 %v215, %v924
    %v926 = vpop.f32.mrf.mxu0
    %v927 = vadd.f32 %v211, %v926
    %v928 = vpop.f32.mrf.mxu0
    %v929 = vadd.f32 %v215, %v928
    %930 = vdwg.mxu0
    %931 = vmatprep.subr.bf16.mxu0 %v725
    %932 = vmatpush1.bf16.msra.mxu0 %v724
    %933 = vmatprep.subr.bf16.mxu0 %v721
    %934 = vmatpush1.bf16.msra.mxu0 %v720
    %935 = vmatprep.subr.bf16.mxu0 %v717
    %936 = vmatpush1.bf16.msra.mxu0 %v716
    %937 = vmatprep.subr.bf16.mxu0 %v713
    %938 = vmatpush1.bf16.msra.mxu0 %v712
    %939 = vmatprep.subr.bf16.mxu0 %v709
    %940 = vmatpush1.bf16.msra.mxu0 %v708
    %941 = vmatprep.subr.bf16.mxu0 %v705
    %942 = vmatpush1.bf16.msra.mxu0 %v704
    %943 = vmatprep.subr.bf16.mxu0 %v701
    %944 = vmatpush1.bf16.msra.mxu0 %v700
    %945 = vmatprep.subr.bf16.mxu0 %v697
    %946 = vmatpush1.bf16.msra.mxu0 %v696
    %947 = vmatprep.subr.bf16.mxu0 %v757
    %948 = vmatpush2.bf16.msra.mxu0 %v756
    %949 = vmatprep.subr.bf16.mxu0 %v753
    %950 = vmatpush2.bf16.msra.mxu0 %v752
    %951 = vmatprep.subr.bf16.mxu0 %v749
    %952 = vmatpush2.bf16.msra.mxu0 %v748
    %953 = vmatprep.subr.bf16.mxu0 %v745
    %954 = vmatpush2.bf16.msra.mxu0 %v744
    %955 = vmatprep.subr.bf16.mxu0 %v741
    %956 = vmatpush2.bf16.msra.mxu0 %v740
    %957 = vmatprep.subr.bf16.mxu0 %v737
    %958 = vmatpush2.bf16.msra.mxu0 %v736
    %959 = vmatprep.subr.bf16.mxu0 %v733
    %960 = vmatpush2.bf16.msra.mxu0 %v732
    %961 = vmatprep.subr.bf16.mxu0 %v729
    %962 = vmatpush2.bf16.msra.mxu0 %v728
    %963 = vmatprep.mubr.bf16.mxu0 %v243
    %964 = vmatmul.mubr.bf16.gmra.mxu0 %v242
    %v965 = vpop.f32.mrf.mxu0
    %v966 = vadd.f32 %v923, %v965
    %v967 = vpop.f32.mrf.mxu0
    %v968 = vadd.f32 %v925, %v967
    %v969 = vpop.f32.mrf.mxu0
    %v970 = vadd.f32 %v927, %v969
    %v971 = vpop.f32.mrf.mxu0
    %v972 = vadd.f32 %v929, %v971
    %973 = vdwg.mxu0
    %974 = vmatprep.subr.bf16.mxu0 %v663
    %975 = vmatpush1.bf16.msra.mxu0 %v662
    %976 = vmatprep.subr.bf16.mxu0 %v659
    %977 = vmatpush1.bf16.msra.mxu0 %v658
    %978 = vmatprep.subr.bf16.mxu0 %v655
    %979 = vmatpush1.bf16.msra.mxu0 %v654
    %980 = vmatprep.subr.bf16.mxu0 %v651
    %981 = vmatpush1.bf16.msra.mxu0 %v650
    %982 = vmatprep.subr.bf16.mxu0 %v647
    %983 = vmatpush1.bf16.msra.mxu0 %v646
    %984 = vmatprep.subr.bf16.mxu0 %v643
    %985 = vmatpush1.bf16.msra.mxu0 %v642
    %986 = vmatprep.subr.bf16.mxu0 %v639
    %987 = vmatpush1.bf16.msra.mxu0 %v638
    %988 = vmatprep.subr.bf16.mxu0 %v635
    %989 = vmatpush1.bf16.msra.mxu0 %v634
    %990 = vmatprep.subr.bf16.mxu0 %v695
    %991 = vmatpush2.bf16.msra.mxu0 %v694
    %992 = vmatprep.subr.bf16.mxu0 %v691
    %993 = vmatpush2.bf16.msra.mxu0 %v690
    %994 = vmatprep.subr.bf16.mxu0 %v687
    %995 = vmatpush2.bf16.msra.mxu0 %v686
    %996 = vmatprep.subr.bf16.mxu0 %v683
    %997 = vmatpush2.bf16.msra.mxu0 %v682
    %998 = vmatprep.subr.bf16.mxu0 %v679
    %999 = vmatpush2.bf16.msra.mxu0 %v678
    %1000 = vmatprep.subr.bf16.mxu0 %v675
    %1001 = vmatpush2.bf16.msra.mxu0 %v674
    %1002 = vmatprep.subr.bf16.mxu0 %v671
    %1003 = vmatpush2.bf16.msra.mxu0 %v670
    %1004 = vmatprep.subr.bf16.mxu0 %v667
    %1005 = vmatpush2.bf16.msra.mxu0 %v666
    %1006 = vmatprep.mubr.bf16.mxu0 %v241
    %1007 = vmatmul.mubr.bf16.gmra.mxu0 %v240
    %v1008 = vpop.f32.mrf.mxu0
    %v1009 = vadd.f32 %v219, %v1008
    %v1010 = vpop.f32.mrf.mxu0
    %v1011 = vadd.f32 %v223, %v1010
    %v1012 = vpop.f32.mrf.mxu0
    %v1013 = vadd.f32 %v219, %v1012
    %v1014 = vpop.f32.mrf.mxu0
    %v1015 = vadd.f32 %v223, %v1014
    %1016 = vdwg.mxu0
    %1017 = vmatprep.subr.bf16.mxu0 %v727
    %1018 = vmatpush1.bf16.msra.mxu0 %v726
    %1019 = vmatprep.subr.bf16.mxu0 %v723
    %1020 = vmatpush1.bf16.msra.mxu0 %v722
    %1021 = vmatprep.subr.bf16.mxu0 %v719
    %1022 = vmatpush1.bf16.msra.mxu0 %v718
    %1023 = vmatprep.subr.bf16.mxu0 %v715
    %1024 = vmatpush1.bf16.msra.mxu0 %v714
    %1025 = vmatprep.subr.bf16.mxu0 %v711
    %1026 = vmatpush1.bf16.msra.mxu0 %v710
    %1027 = vmatprep.subr.bf16.mxu0 %v707
    %1028 = vmatpush1.bf16.msra.mxu0 %v706
    %1029 = vmatprep.subr.bf16.mxu0 %v703
    %1030 = vmatpush1.bf16.msra.mxu0 %v702
    %1031 = vmatprep.subr.bf16.mxu0 %v699
    %1032 = vmatpush1.bf16.msra.mxu0 %v698
    %1033 = vmatprep.subr.bf16.mxu0 %v759
    %1034 = vmatpush2.bf16.msra.mxu0 %v758
    %1035 = vmatprep.subr.bf16.mxu0 %v755
    %1036 = vmatpush2.bf16.msra.mxu0 %v754
    %1037 = vmatprep.subr.bf16.mxu0 %v751
    %1038 = vmatpush2.bf16.msra.mxu0 %v750
    %1039 = vmatprep.subr.bf16.mxu0 %v747
    %1040 = vmatpush2.bf16.msra.mxu0 %v746
    %1041 = vmatprep.subr.bf16.mxu0 %v743
    %1042 = vmatpush2.bf16.msra.mxu0 %v742
    %1043 = vmatprep.subr.bf16.mxu0 %v739
    %1044 = vmatpush2.bf16.msra.mxu0 %v738
    %1045 = vmatprep.subr.bf16.mxu0 %v735
    %1046 = vmatpush2.bf16.msra.mxu0 %v734
    %1047 = vmatprep.subr.bf16.mxu0 %v731
    %1048 = vmatpush2.bf16.msra.mxu0 %v730
    %1049 = vmatprep.mubr.bf16.mxu0 %v243
    %1050 = vmatmul.mubr.bf16.gmra.mxu0 %v242
    %v1051 = vpop.f32.mrf.mxu0
    %v1052 = vadd.f32 %v1009, %v1051
    %v1053 = vpop.f32.mrf.mxu0
    %v1054 = vadd.f32 %v1011, %v1053
    %v1055 = vpop.f32.mrf.mxu0
    %v1056 = vadd.f32 %v1013, %v1055
    %v1057 = vpop.f32.mrf.mxu0
    %v1058 = vadd.f32 %v1015, %v1057
    %1059 = vdwg.mxu0
    %v1060 = vmax.f32 %v966, 0.0
    %v1061 = vmax.f32 %v968, 0.0
    %v1062 = vmax.f32 %v1052, 0.0
    %v1063 = vmax.f32 %v1054, 0.0
    %v1064 = vmax.f32 %v970, 0.0
    %v1065 = vmax.f32 %v972, 0.0
    %v1066 = vmax.f32 %v1056, 0.0
    %v1067 = vmax.f32 %v1058, 0.0
    %v1068 = vpack.c.bf16 %v1064, %v1060
    %v1069 = vpack.c.bf16 %v1065, %v1061
    %v1070 = vpack.c.bf16 %v1066, %v1062
    %v1071 = vpack.c.bf16 %v1067, %v1063
    %v1072 = vld [vmem:[#allocation7] sm:$0xf]
    %v1073 = vld [vmem:[#allocation7 + $0x4] sm:$0xf]
    %v1074 = vld [vmem:[#allocation7 + $0x8] sm:$0xf]
    %v1075 = vld [vmem:[#allocation7 + $0xc] sm:$0xf]
    %v1076 = vld [vmem:[#allocation7 + $0x10] sm:$0xf]
    %v1077 = vld [vmem:[#allocation7 + $0x14] sm:$0xf]
    %v1078 = vld [vmem:[#allocation7 + $0x18] sm:$0xf]
    %v1079 = vld [vmem:[#allocation7 + $0x1c] sm:$0xf]
    %v1080 = vld [vmem:[#allocation7 + $0x20] sm:$0xf]
    %v1081 = vld [vmem:[#allocation7 + $0x24] sm:$0xf]
    %v1082 = vld [vmem:[#allocation7 + $0x28] sm:$0xf]
    %v1083 = vld [vmem:[#allocation7 + $0x2c] sm:$0xf]
    %v1084 = vld [vmem:[#allocation7 + $0x30] sm:$0xf]
    %v1085 = vld [vmem:[#allocation7 + $0x34] sm:$0xf]
    %v1086 = vld [vmem:[#allocation7 + $0x38] sm:$0xf]
    %v1087 = vld [vmem:[#allocation7 + $0x3c] sm:$0xf]
    %v1088 = vld [vmem:[#allocation7 + $0x40] sm:$0xf]
    %v1089 = vld [vmem:[#allocation7 + $0x44] sm:$0xf]
    %v1090 = vld [vmem:[#allocation7 + $0x48] sm:$0xf]
    %v1091 = vld [vmem:[#allocation7 + $0x4c] sm:$0xf]
    %v1092 = vld [vmem:[#allocation7 + $0x50] sm:$0xf]
    %v1093 = vld [vmem:[#allocation7 + $0x54] sm:$0xf]
    %v1094 = vld [vmem:[#allocation7 + $0x58] sm:$0xf]
    %v1095 = vld [vmem:[#allocation7 + $0x5c] sm:$0xf]
    %v1096 = vld [vmem:[#allocation7 + $0x60] sm:$0xf]
    %v1097 = vld [vmem:[#allocation7 + $0x64] sm:$0xf]
    %v1098 = vld [vmem:[#allocation7 + $0x68] sm:$0xf]
    %v1099 = vld [vmem:[#allocation7 + $0x6c] sm:$0xf]
    %v1100 = vld [vmem:[#allocation7 + $0x70] sm:$0xf]
    %v1101 = vld [vmem:[#allocation7 + $0x74] sm:$0xf]
    %v1102 = vld [vmem:[#allocation7 + $0x78] sm:$0xf]
    %v1103 = vld [vmem:[#allocation7 + $0x7c] sm:$0xf]
    %v1104 = vld [vmem:[#allocation7 + $0x80] sm:$0xf]
    %v1105 = vld [vmem:[#allocation7 + $0x84] sm:$0xf]
    %v1106 = vld [vmem:[#allocation7 + $0x88] sm:$0xf]
    %v1107 = vld [vmem:[#allocation7 + $0x8c] sm:$0xf]
    %v1108 = vld [vmem:[#allocation7 + $0x90] sm:$0xf]
    %v1109 = vld [vmem:[#allocation7 + $0x94] sm:$0xf]
    %v1110 = vld [vmem:[#allocation7 + $0x98] sm:$0xf]
    %v1111 = vld [vmem:[#allocation7 + $0x9c] sm:$0xf]
    %v1112 = vld [vmem:[#allocation7 + $0xa0] sm:$0xf]
    %v1113 = vld [vmem:[#allocation7 + $0xa4] sm:$0xf]
    %v1114 = vld [vmem:[#allocation7 + $0xa8] sm:$0xf]
    %v1115 = vld [vmem:[#allocation7 + $0xac] sm:$0xf]
    %v1116 = vld [vmem:[#allocation7 + $0xb0] sm:$0xf]
    %v1117 = vld [vmem:[#allocation7 + $0xb4] sm:$0xf]
    %v1118 = vld [vmem:[#allocation7 + $0xb8] sm:$0xf]
    %v1119 = vld [vmem:[#allocation7 + $0xbc] sm:$0xf]
    %v1120 = vld [vmem:[#allocation7 + $0xc0] sm:$0xf]
    %v1121 = vld [vmem:[#allocation7 + $0xc4] sm:$0xf]
    %v1122 = vld [vmem:[#allocation7 + $0xc8] sm:$0xf]
    %v1123 = vld [vmem:[#allocation7 + $0xcc] sm:$0xf]
    %v1124 = vld [vmem:[#allocation7 + $0xd0] sm:$0xf]
    %v1125 = vld [vmem:[#allocation7 + $0xd4] sm:$0xf]
    %v1126 = vld [vmem:[#allocation7 + $0xd8] sm:$0xf]
    %v1127 = vld [vmem:[#allocation7 + $0xdc] sm:$0xf]
    %v1128 = vld [vmem:[#allocation7 + $0xe0] sm:$0xf]
    %v1129 = vld [vmem:[#allocation7 + $0xe4] sm:$0xf]
    %v1130 = vld [vmem:[#allocation7 + $0xe8] sm:$0xf]
    %v1131 = vld [vmem:[#allocation7 + $0xec] sm:$0xf]
    %v1132 = vld [vmem:[#allocation7 + $0xf0] sm:$0xf]
    %v1133 = vld [vmem:[#allocation7 + $0xf4] sm:$0xf]
    %v1134 = vld [vmem:[#allocation7 + $0xf8] sm:$0xf]
    %v1135 = vld [vmem:[#allocation7 + $0xfc] sm:$0xf]
    %v1136 = vld [vmem:[%s4] sm:$0x1]
    %v1138 = vlaneseq
    %v1139 = vshrl.u32 %v1138, 7
    %v1140 = vsub.s32 0, %v1139
    %v1141 = vrot.slane %v1136, %v1140
    %v1207 = vunpack.c.l.b16 %v1072
    %v1208 = vunpack.c.l.b16 %v1073
    %v1209 = vunpack.c.l.b16 %v1074
    %v1210 = vunpack.c.l.b16 %v1075
    %v1211 = vunpack.c.l.b16 %v1076
    %v1212 = vunpack.c.l.b16 %v1077
    %v1213 = vunpack.c.l.b16 %v1078
    %v1214 = vunpack.c.l.b16 %v1079
    %v1215 = vunpack.c.l.b16 %v1080
    %v1216 = vunpack.c.l.b16 %v1081
    %v1217 = vunpack.c.l.b16 %v1082
    %v1218 = vunpack.c.l.b16 %v1083
    %v1219 = vunpack.c.l.b16 %v1084
    %v1220 = vunpack.c.l.b16 %v1085
    %v1221 = vunpack.c.l.b16 %v1086
    %v1222 = vunpack.c.l.b16 %v1087
    %v1223 = vunpack.c.l.b16 %v1088
    %v1224 = vunpack.c.l.b16 %v1089
    %v1225 = vunpack.c.l.b16 %v1090
    %v1226 = vunpack.c.l.b16 %v1091
    %v1227 = vunpack.c.l.b16 %v1092
    %v1228 = vunpack.c.l.b16 %v1093
    %v1229 = vunpack.c.l.b16 %v1094
    %v1230 = vunpack.c.l.b16 %v1095
    %v1231 = vunpack.c.l.b16 %v1096
    %v1232 = vunpack.c.l.b16 %v1097
    %v1233 = vunpack.c.l.b16 %v1098
    %v1234 = vunpack.c.l.b16 %v1099
    %v1235 = vunpack.c.l.b16 %v1100
    %v1236 = vunpack.c.l.b16 %v1101
    %v1237 = vunpack.c.l.b16 %v1102
    %v1238 = vunpack.c.l.b16 %v1103
    %v1239 = vunpack.c.l.b16 %v1104
    %v1240 = vunpack.c.l.b16 %v1105
    %v1241 = vunpack.c.l.b16 %v1106
    %v1242 = vunpack.c.l.b16 %v1107
    %v1243 = vunpack.c.l.b16 %v1108
    %v1244 = vunpack.c.l.b16 %v1109
    %v1245 = vunpack.c.l.b16 %v1110
    %v1246 = vunpack.c.l.b16 %v1111
    %v1247 = vunpack.c.l.b16 %v1112
    %v1248 = vunpack.c.l.b16 %v1113
    %v1249 = vunpack.c.l.b16 %v1114
    %v1250 = vunpack.c.l.b16 %v1115
    %v1251 = vunpack.c.l.b16 %v1116
    %v1252 = vunpack.c.l.b16 %v1117
    %v1253 = vunpack.c.l.b16 %v1118
    %v1254 = vunpack.c.l.b16 %v1119
    %v1255 = vunpack.c.l.b16 %v1120
    %v1256 = vunpack.c.l.b16 %v1121
    %v1257 = vunpack.c.l.b16 %v1122
    %v1258 = vunpack.c.l.b16 %v1123
    %v1259 = vunpack.c.l.b16 %v1124
    %v1260 = vunpack.c.l.b16 %v1125
    %v1261 = vunpack.c.l.b16 %v1126
    %v1262 = vunpack.c.l.b16 %v1127
    %v1263 = vunpack.c.l.b16 %v1128
    %v1264 = vunpack.c.l.b16 %v1129
    %v1265 = vunpack.c.l.b16 %v1130
    %v1266 = vunpack.c.l.b16 %v1131
    %v1267 = vunpack.c.l.b16 %v1132
    %v1268 = vunpack.c.l.b16 %v1133
    %v1269 = vunpack.c.l.b16 %v1134
    %v1270 = vunpack.c.l.b16 %v1135
    %v1271 = vpack.c.b16 %v1208, %v1207
    %v1272 = vpack.c.b16 %v1210, %v1209
    %v1273 = vpack.c.b16 %v1212, %v1211
    %v1274 = vpack.c.b16 %v1214, %v1213
    %v1275 = vpack.c.b16 %v1216, %v1215
    %v1276 = vpack.c.b16 %v1218, %v1217
    %v1277 = vpack.c.b16 %v1220, %v1219
    %v1278 = vpack.c.b16 %v1222, %v1221
    %v1279 = vpack.c.b16 %v1224, %v1223
    %v1280 = vpack.c.b16 %v1226, %v1225
    %v1281 = vpack.c.b16 %v1228, %v1227
    %v1282 = vpack.c.b16 %v1230, %v1229
    %v1283 = vpack.c.b16 %v1232, %v1231
    %v1284 = vpack.c.b16 %v1234, %v1233
    %v1285 = vpack.c.b16 %v1236, %v1235
    %v1286 = vpack.c.b16 %v1238, %v1237
    %v1287 = vpack.c.b16 %v1240, %v1239
    %v1288 = vpack.c.b16 %v1242, %v1241
    %v1289 = vpack.c.b16 %v1244, %v1243
    %v1290 = vpack.c.b16 %v1246, %v1245
    %v1291 = vpack.c.b16 %v1248, %v1247
    %v1292 = vpack.c.b16 %v1250, %v1249
    %v1293 = vpack.c.b16 %v1252, %v1251
    %v1294 = vpack.c.b16 %v1254, %v1253
    %v1295 = vpack.c.b16 %v1256, %v1255
    %v1296 = vpack.c.b16 %v1258, %v1257
    %v1297 = vpack.c.b16 %v1260, %v1259
    %v1298 = vpack.c.b16 %v1262, %v1261
    %v1299 = vpack.c.b16 %v1264, %v1263
    %v1300 = vpack.c.b16 %v1266, %v1265
    %v1301 = vpack.c.b16 %v1268, %v1267
    %v1302 = vpack.c.b16 %v1270, %v1269
    %1335 = vmatprep.subr.bf16.mxu0 0
    %1336 = vmatpush1.bf16.msra.mxu0 %v1278
    %1337 = vmatprep.subr.bf16.mxu0 0
    %1338 = vmatpush1.bf16.msra.mxu0 %v1277
    %1339 = vmatprep.subr.bf16.mxu0 0
    %1340 = vmatpush1.bf16.msra.mxu0 %v1276
    %1341 = vmatprep.subr.bf16.mxu0 0
    %1342 = vmatpush1.bf16.msra.mxu0 %v1275
    %1343 = vmatprep.subr.bf16.mxu0 0
    %1344 = vmatpush1.bf16.msra.mxu0 %v1274
    %1345 = vmatprep.subr.bf16.mxu0 0
    %1346 = vmatpush1.bf16.msra.mxu0 %v1273
    %1347 = vmatprep.subr.bf16.mxu0 0
    %1348 = vmatpush1.bf16.msra.mxu0 %v1272
    %1349 = vmatprep.subr.bf16.mxu0 0
    %1350 = vmatpush1.bf16.msra.mxu0 %v1271
    %1351 = vmatprep.subr.bf16.mxu0 0
    %1352 = vmatpush2.bf16.msra.mxu0 %v1286
    %1353 = vmatprep.subr.bf16.mxu0 0
    %1354 = vmatpush2.bf16.msra.mxu0 %v1285
    %1355 = vmatprep.subr.bf16.mxu0 0
    %1356 = vmatpush2.bf16.msra.mxu0 %v1284
    %1357 = vmatprep.subr.bf16.mxu0 0
    %1358 = vmatpush2.bf16.msra.mxu0 %v1283
    %1359 = vmatprep.subr.bf16.mxu0 0
    %1360 = vmatpush2.bf16.msra.mxu0 %v1282
    %1361 = vmatprep.subr.bf16.mxu0 0
    %1362 = vmatpush2.bf16.msra.mxu0 %v1281
    %1363 = vmatprep.subr.bf16.mxu0 0
    %1364 = vmatpush2.bf16.msra.mxu0 %v1280
    %1365 = vmatprep.subr.bf16.mxu0 0
    %1366 = vmatpush2.bf16.msra.mxu0 %v1279
    %1367 = vmatprep.mubr.bf16.mxu0 %v1069
    %1368 = vmatmul.mubr.bf16.gmra.mxu0 %v1068
    %v1369 = vpop.f32.mrf.mxu0
    %v1370 = vadd.f32 %v1141, %v1369
    %v1371 = vpop.f32.mrf.mxu0
    %v1372 = vpop.f32.mrf.mxu0
    %v1373 = vadd.f32 %v1141, %v1372
    %v1374 = vpop.f32.mrf.mxu0
    %1375 = vdwg.mxu0
    %1376 = vmatprep.subr.bf16.mxu0 0
    %1377 = vmatpush1.bf16.msra.mxu0 %v1294
    %1378 = vmatprep.subr.bf16.mxu0 0
    %1379 = vmatpush1.bf16.msra.mxu0 %v1293
    %1380 = vmatprep.subr.bf16.mxu0 0
    %1381 = vmatpush1.bf16.msra.mxu0 %v1292
    %1382 = vmatprep.subr.bf16.mxu0 0
    %1383 = vmatpush1.bf16.msra.mxu0 %v1291
    %1384 = vmatprep.subr.bf16.mxu0 0
    %1385 = vmatpush1.bf16.msra.mxu0 %v1290
    %1386 = vmatprep.subr.bf16.mxu0 0
    %1387 = vmatpush1.bf16.msra.mxu0 %v1289
    %1388 = vmatprep.subr.bf16.mxu0 0
    %1389 = vmatpush1.bf16.msra.mxu0 %v1288
    %1390 = vmatprep.subr.bf16.mxu0 0
    %1391 = vmatpush1.bf16.msra.mxu0 %v1287
    %1392 = vmatprep.subr.bf16.mxu0 0
    %1393 = vmatpush2.bf16.msra.mxu0 %v1302
    %1394 = vmatprep.subr.bf16.mxu0 0
    %1395 = vmatpush2.bf16.msra.mxu0 %v1301
    %1396 = vmatprep.subr.bf16.mxu0 0
    %1397 = vmatpush2.bf16.msra.mxu0 %v1300
    %1398 = vmatprep.subr.bf16.mxu0 0
    %1399 = vmatpush2.bf16.msra.mxu0 %v1299
    %1400 = vmatprep.subr.bf16.mxu0 0
    %1401 = vmatpush2.bf16.msra.mxu0 %v1298
    %1402 = vmatprep.subr.bf16.mxu0 0
    %1403 = vmatpush2.bf16.msra.mxu0 %v1297
    %1404 = vmatprep.subr.bf16.mxu0 0
    %1405 = vmatpush2.bf16.msra.mxu0 %v1296
    %1406 = vmatprep.subr.bf16.mxu0 0
    %1407 = vmatpush2.bf16.msra.mxu0 %v1295
    %1408 = vmatprep.mubr.bf16.mxu0 %v1071
    %1409 = vmatmul.mubr.bf16.gmra.mxu0 %v1070
    %v1410 = vpop.f32.mrf.mxu0
    %v1411 = vadd.f32 %v1370, %v1410
    %v1412 = vpop.f32.mrf.mxu0
    %v1413 = vpop.f32.mrf.mxu0
    %v1414 = vadd.f32 %v1373, %v1413
    %v1415 = vpop.f32.mrf.mxu0
    %1416 = vdwg.mxu0
    %v1417 = vpack.c.bf16 %v1414, %v1411
    %v1419 = vunpack.c.l.b16 %v1417
    %v1420 = vunpack.c.h.b16 %v1417
    %v1421 = vpack.c.b16 %v1419, %v1419
    %v1422 = vpack.c.b16 %v1420, %v1420
    %1425 = vst [vmem:[#allocation9] sm:$0xf] %v1421
    %1426 = vst [vmem:[#allocation9 + $0x4] sm:$0xf] %v1422
    // Predicated region
    $region38: #{discriminator_forward.1} parent=1 // pred_check
      _
    $region39: #{discriminator_forward.1} parent=1 // pred_check_branch
      %1428 = sbr.rel (0) target = $region41
    $region40: #{discriminator_forward.1} parent=1 // pred_region
      // Predicated region
      $region42: #{discriminator_forward.1} parent=40 // pred_check
        _
      $region43: #{discriminator_forward.1} parent=40 // pred_check_branch
        %1430 = sbr.rel (0) target = $region45
      $region44: #{discriminator_forward.1} parent=40 // pred_region
        // Predicated region
        $region46: #{discriminator_forward.1} parent=44 // pred_check
          _
        $region47: #{discriminator_forward.1} parent=44 // pred_check_branch
          %1432 = sbr.rel target = $region49
        $region48: #{discriminator_forward.1} parent=44 // pred_region
          // Predicated region
          $region61: #{discriminator_forward.1} parent=48 // pred_check
            _
          $region62: #{discriminator_forward.1} parent=48 // pred_check_branch
            %1448 = sbr.rel (0) target = $region64
          $region63: #{discriminator_forward.1} parent=48 // pred_region
            %s1450 = ssub.s32 16, 1
            loop: start=0, step=1, limit=1
            $region65: #{discriminator_forward.1} parent=63 // loop_pre_header
              _
            $region66: #{discriminator_forward.1} parent=63 // loop_header
              %s1452 = sphi 0, %s1456
              %p1453 = scmp.ge.s32.totalorder %s1452, 1
              %s1457 = sphi [#allocation9], [#allocation9]
              %s1458 = sphi %s5, %s5
            $region67: #{discriminator_forward.1} parent=63 // loop_header_branch
              %1455 = sbr.rel (%p1453) target = $region71
            $region68: #{discriminator_forward.1} parent=63 // loop_body
              %v1459 = vld [vmem:[%s1457] sm:%s1450]
              %1460 = vst [vmem:[%s1458] sm:%s1450] %v1459
            $region69: #{discriminator_forward.1} parent=63 // loop_footer
              %s1456 = sadd.s32 1, %s1452
            $region70: #{discriminator_forward.1} parent=63 // loop_footer_branch
              %1451 = sbr.rel target = $region66
            $region71: #{discriminator_forward.1} parent=63 // loop_exit
              _
          $region64: #{discriminator_forward.1} parent=48 // pred_fallthru
            _
        $region49: #{discriminator_forward.1} parent=44 // pred_fallthru
          _
        // Predicated region
        $region50: #{discriminator_forward.1} parent=44 // pred_check
          _
        $region51: #{discriminator_forward.1} parent=44 // pred_check_branch
          %1434 = sbr.rel (0) target = $region53
        $region52: #{discriminator_forward.1} parent=44 // pred_region
          %s1436 = ssub.s32 16, 1
          loop: start=0, step=1, limit=1
          $region54: #{discriminator_forward.1} parent=52 // loop_pre_header
            _
          $region55: #{discriminator_forward.1} parent=52 // loop_header
            %s1438 = sphi 0, %s1442
            %p1439 = scmp.ge.s32.totalorder %s1438, 1
            %s1443 = sphi [#allocation9], [#allocation9]
            %s1444 = sphi %s5, %s5
          $region56: #{discriminator_forward.1} parent=52 // loop_header_branch
            %1441 = sbr.rel (%p1439) target = $region60
          $region57: #{discriminator_forward.1} parent=52 // loop_body
            %v1445 = vld [vmem:[%s1443] sm:%s1436]
            %1446 = vst [vmem:[%s1444] sm:%s1436] %v1445
          $region58: #{discriminator_forward.1} parent=52 // loop_footer
            %s1442 = sadd.s32 1, %s1438
          $region59: #{discriminator_forward.1} parent=52 // loop_footer_branch
            %1437 = sbr.rel target = $region55
          $region60: #{discriminator_forward.1} parent=52 // loop_exit
            _
        $region53: #{discriminator_forward.1} parent=44 // pred_fallthru
          _
      $region45: #{discriminator_forward.1} parent=40 // pred_fallthru
        _
      %1461 = vnop
    $region41: #{discriminator_forward.1} parent=1 // pred_fallthru
      _
    // Predicated region
    $region72: #{discriminator_forward.1} parent=1 // pred_check
      _
    $region73: #{discriminator_forward.1} parent=1 // pred_check_branch
      %1463 = sbr.rel (0) target = $region75
    $region74: #{discriminator_forward.1} parent=1 // pred_region
      _
    $region75: #{discriminator_forward.1} parent=1 // pred_fallthru
      _
    %1464 = vsyncpa [#allocation3], 1
    %1465 = vsyncpa [#allocation5], 1
    %1466 = vsyncpa [#allocation8], 1

</llo_original>
